<compile_context>
chip_gen: v7x
topology: tpu7x:2x2x1
jax: 0.10.0
libtpu: 0.0.40
codegen_flags: <defaults>
</compile_context>

<pallas_src>
import functools

import numpy as np

import jax
import jax.numpy as jnp
from jax import lax
from jax.experimental import pallas as pl
from jax.experimental.pallas import tpu as pltpu

EPS = 0.1   # FAConv defaults: eps=0.1, dropout=0.0, add_self_loops=True, normalize=True
_VMEM_LIMIT = 32 * 1024 * 1024


def _round_up(v, m):
    return ((v + m - 1) // m) * m


def _pick_tile(n, tile):
    """Largest tile in {512,256,128} <= `tile` that still gives >=2 row tiles (v7x megacore)."""
    for cand in (512, 256, 128):
        if cand <= tile and (cand == 128 or _round_up(n, cand) // cand >= 2):
            return cand
    return 128


# --------------------------------------------------------------------------------------
# FAConv layer kernel over a compacted (row-tile, nonzero-col-tile) grid:
#   o[r-tile] = eps * x0[r-tile] + sum_{c in nnz(r)} (adj[r,c] * tanh(a_r + a_l)) @ x[c-tile]
# --------------------------------------------------------------------------------------
def _make_faconv_kernel(C, bf16_gate):
    def kernel(cols_ref, valid_ref, adj_ref, xc_ref, al_ref, ar_ref, x0_ref, o_ref):
        r = pl.program_id(0)
        c = pl.program_id(1)

        # Output tile is resident across the c axis; initialize with the residual.
        @pl.when(c == 0)
        def _():
            o_ref[...] = EPS * x0_ref[...]

        # Padded schedule slots repeat the previous column index (no DMA) and are skipped.
        @pl.when(valid_ref[r * C + c] != 0)
        def _():
            gate = ar_ref[...] + al_ref[...]               # (t,1)+(1,t) -> (t,t), f32 sum
            if bf16_gate:
                att = jnp.tanh(gate.astype(jnp.bfloat16))  # bf16 EUP (v6e / v7x)
                s = adj_ref[...] * att                     # bf16 VPU, no casts
            else:
                att = jnp.tanh(gate)                       # f32 EUP (v5e-safe path)
                s = (adj_ref[...].astype(jnp.float32) * att).astype(jnp.bfloat16)
            o_ref[...] += jnp.dot(s, xc_ref[...],
                                  preferred_element_type=jnp.float32)
    return kernel


def _faconv_layer(cols, valid, adj_bf16, x_bf16, al, ar, x0, *,
                  t, np_, dp, C, bf16_gate):
    rt = np_ // t
    grid_spec = pltpu.PrefetchScalarGridSpec(
        num_scalar_prefetch=2,
        grid=(rt, C),
        in_specs=[
            # adjacency tile (bf16): column block taken from the compacted schedule
            pl.BlockSpec((t, t),  lambda r, c, cs, vd: (r, cs[r * C + c])),
            # x column tile (bf16)
            pl.BlockSpec((t, dp), lambda r, c, cs, vd: (cs[r * C + c], 0)),
            # a_l, lane-dense (1, np_) row, column-tile slice
            pl.BlockSpec((1, t),  lambda r, c, cs, vd: (0, cs[r * C + c])),
            # a_r, (np_, 1) column, row-tile slice (fetched once per row tile)
            pl.BlockSpec((t, 1),  lambda r, c, cs, vd: (r, 0)),
            # x0 residual row tile (f32, fetched once per row tile)
            pl.BlockSpec((t, dp), lambda r, c, cs, vd: (r, 0)),
        ],
        out_specs=pl.BlockSpec((t, dp), lambda r, c, cs, vd: (r, 0)),
    )
    return pl.pallas_call(
        _make_faconv_kernel(C, bf16_gate),
        out_shape=jax.ShapeDtypeStruct((np_, dp), jnp.float32),
        grid_spec=grid_spec,
        compiler_params=pltpu.CompilerParams(
            dimension_semantics=("parallel", "arbitrary"),
            vmem_limit_bytes=_VMEM_LIMIT),
    )(cols, valid, adj_bf16, x_bf16, al, ar, x0)


# --------------------------------------------------------------------------------------
# global_mean_pool kernel: out (gp, dp) accumulates pool[:, r-tile] @ x[r-tile]
# --------------------------------------------------------------------------------------
def _pool_kernel(pool_ref, x_ref, o_ref):
    @pl.when(pl.program_id(0) == 0)
    def _():
        o_ref[...] = jnp.zeros_like(o_ref)
    o_ref[...] += jnp.dot(pool_ref[...], x_ref[...],
                          preferred_element_type=jnp.float32)


def _global_mean_pool(pool, x, *, t, np_, dp, gp):
    rt = np_ // t
    return pl.pallas_call(
        _pool_kernel,
        out_shape=jax.ShapeDtypeStruct((gp, dp), jnp.float32),
        grid=(rt,),
        in_specs=[
            pl.BlockSpec((gp, t), lambda r: (0, r)),
            pl.BlockSpec((t, dp), lambda r: (r, 0)),
        ],
        out_specs=pl.BlockSpec((gp, dp), lambda r: (0, 0)),
        compiler_params=pltpu.CompilerParams(
            dimension_semantics=("arbitrary",),
            vmem_limit_bytes=_VMEM_LIMIT),
    )(pool, x)


# --------------------------------------------------------------------------------------
# Jitted forward: Embedding -> 3x FAConv -> global_mean_pool
# --------------------------------------------------------------------------------------
@functools.partial(jax.jit, static_argnames=("num_graphs", "t", "C", "bf16_gate"))
def _forward(x_idx, edge_index, batch, emb, wl, wr, cols, valid, *,
             num_graphs, t, C, bf16_gate):
    N = x_idx.shape[0]
    D = emb.shape[1]
    dp = _round_up(D, 128)                       # lane-dense hidden dim
    np_ = _round_up(max(N, 1), t)                # padded node count
    gp = _round_up(max(num_graphs, 1), 8)        # padded graph count

    emb = emb.astype(jnp.float32)
    wl = wl.astype(jnp.float32)
    wr = wr.astype(jnp.float32)

    # ---- glue: embedding lookup (vocab size 2), padded lane-dense ----
    x0 = jnp.zeros((np_, dp), jnp.float32).at[:N, :D].set(jnp.take(emb, x_idx, axis=0))

    # ---- glue: padded attention weights (zero lanes keep the matvec exact) ----
    wl_p = jnp.zeros((3, dp), jnp.float32).at[:, :D].set(wl)
    wr_p = jnp.zeros((3, dp), jnp.float32).at[:, :D].set(wr)

    # ---- glue: gcn_norm dense adjacency with self-loops (target-major), built in bf16 ----
    row, col = edge_index[0], edge_index[1]      # source, target
    loop = jnp.arange(N, dtype=row.dtype)
    row = jnp.concatenate([row, loop])
    col = jnp.concatenate([col, loop])
    ew = jnp.ones(row.shape[0], jnp.float32)
    deg = jnp.zeros((N,), jnp.float32).at[col].add(ew)
    dis = jnp.where(deg > 0, lax.rsqrt(deg), 0.0)
    norm = (dis[row] * ew * dis[col]).astype(jnp.bfloat16)
    adj_bf16 = jnp.zeros((np_, np_), jnp.bfloat16).at[col, row].add(norm)  # adj[target, source]

    # ---- glue: global_mean_pool matrix (gp, np_) ----
    batch_p = jnp.full((np_,), -1, dtype=batch.dtype).at[:N].set(batch)
    onehot = (batch_p[None, :] ==
              jnp.arange(gp, dtype=batch.dtype)[:, None]).astype(jnp.float32)
    counts = jnp.maximum(onehot.sum(axis=1, keepdims=True), 1.0)
    pool = onehot / counts

    # ---- three FAConv layers (Pallas), compacted nonzero-tile grid ----
    x = x0
    for l in range(3):
        # Hoisted attention scalars: one pass over x per layer, reused by every tile.
        al = (x @ wl_p[l])[None, :]              # (1, np_)  f32, lane-dense
        ar = (x @ wr_p[l])[:, None]              # (np_, 1)  f32
        x_bf16 = x.astype(jnp.bfloat16)          # bf16 column stream for the MXU
        x = _faconv_layer(cols, valid, adj_bf16, x_bf16, al, ar, x0,
                          t=t, np_=np_, dp=dp, C=C, bf16_gate=bf16_gate)

    # ---- mean pooling (Pallas) ----
    out = _global_mean_pool(pool, x, t=t, np_=np_, dp=dp, gp=gp)
    return out[:num_graphs, :D]


def cell_encoder_mut(x_idx, edge_index, batch, params, num_graphs, *,
                     tile=256, bf16_gate=None):
    """Embedding -> 3x FAConv -> global_mean_pool.

    Note: edge_index must be concrete (the compacted tile schedule is built host-side);
    the schedule shape is static per graph-structure, so structural changes recompile.
    """
    if bf16_gate is None:
        kind = jax.devices()[0].device_kind.lower()
        bf16_gate = ("v6" in kind) or ("v7" in kind)   # keep the f32 gate on v5e/older

    N = int(x_idx.shape[0])
    t = _pick_tile(N, tile)
    np_ = _round_up(max(N, 1), t)
    rt = np_ // t

    # ---- host-side compacted tile schedule from the block-diagonal batched graph ----
    e = np.asarray(jax.device_get(edge_index))
    src, dst = e[0], e[1]
    mask = np.zeros((rt, rt), dtype=bool)
    if src.size:
        mask[dst // t, src // t] = True          # adj[target, source] tile occupancy
    diag = np.arange(N) // t
    mask[diag, diag] = True                      # self-loops -> every row tile is visited
    C = int(mask.sum(axis=1).max())
    cols = np.zeros((rt, C), dtype=np.int32)
    valid = np.zeros((rt, C), dtype=np.int32)
    for r in range(rt):
        cs = np.nonzero(mask[r])[0].astype(np.int32)
        cols[r, :cs.size] = cs
        cols[r, cs.size:] = cs[-1]               # repeat last index -> Pallas skips the DMA
        valid[r, :cs.size] = 1
    cols = cols.reshape(-1)
    valid = valid.reshape(-1)

    return _forward(x_idx, edge_index, batch,
                    params["embed1"], params["att_l"], params["att_r"],
                    jnp.asarray(cols), jnp.asarray(valid),
                    num_graphs=int(num_graphs), t=t, C=C, bf16_gate=bool(bf16_gate))


def _reference(x_idx, edge_index, batch, params, num_graphs):
    """Pure-JAX f32 reference mirroring torch_geometric FAConv + global_mean_pool."""
    emb, wl, wr = params["embed1"], params["att_l"], params["att_r"]
    N = x_idx.shape[0]
    x0 = jnp.take(emb, x_idx, axis=0)
    row, col = edge_index[0], edge_index[1]
    loop = jnp.arange(N, dtype=row.dtype)
    row = jnp.concatenate([row, loop])
    col = jnp.concatenate([col, loop])
    ew = jnp.ones(row.shape[0], jnp.float32)
    deg = jnp.zeros((N,), jnp.float32).at[col].add(ew)
    dis = jnp.where(deg > 0, lax.rsqrt(deg), 0.0)
    norm = dis[row] * ew * dis[col]
    adj = jnp.zeros((N, N), jnp.float32).at[col, row].add(norm)
    x = x0
    for l in range(3):
        ar = x @ wr[l]
        al = x @ wl[l]
        att = jnp.tanh(ar[:, None] + al[None, :])
        x = (adj * att) @ x + EPS * x0
    onehot = (batch[None, :] == jnp.arange(num_graphs)[:, None]).astype(jnp.float32)
    counts = jnp.maximum(onehot.sum(axis=1, keepdims=True), 1.0)
    return (onehot / counts) @ x


if __name__ == "__main__":
    key = jax.random.PRNGKey(0)
    N, D, G = 16, 32, 2   # 16 nodes, hidden_dim=32, 2 graphs

    k_emb, k_l, k_r, k_x = jax.random.split(key, 4)
    params = {
        "embed1": jax.random.normal(k_emb, (2, D), jnp.float32),
        "att_l": 0.1 * jax.random.normal(k_l, (3, D), jnp.float32),
        "att_r": 0.1 * jax.random.normal(k_r, (3, D), jnp.float32),
    }

    # node "mutation" indices in {0, 1}
    x_idx = jax.random.randint(k_x, (N,), 0, 2, dtype=jnp.int32)

    # two 8-node ring graphs, undirected (both edge directions listed)
    src, dst = [], []
    for g in range(G):
        base = g * 8
        for i in range(8):
            a, b = base + i, base + (i + 1) % 8
            src += [a, b]
            dst += [b, a]
    edge_index = jnp.array([src, dst], dtype=jnp.int32)      # (2, 32)
    batch = jnp.array([0] * 8 + [1] * 8, dtype=jnp.int32)    # (16,)

    out = cell_encoder_mut(x_idx, edge_index, batch, params, G)
    out = jax.block_until_ready(out)

    ref = _reference(x_idx, edge_index, batch, params, G)
    assert out.shape == (G, D)
    # bf16 adjacency / bf16 MXU operands / (on v6+) bf16 gate -> loosened tolerance.
    assert jnp.allclose(out, ref, rtol=5e-2, atol=5e-2)

    print("KERNEL_OK")
</pallas_src>

<mosaic_0001>
module attributes {stable_mosaic.version = 11 : i64} {
  func.func private @main(%arg0: i32) attributes {dimension_semantics = [#tpu.dimension_semantics<core_parallel>], iteration_bounds = array<i64: 2>, tpu.core_type = #tpu.core_type<sc_scalar_subcore>, window_params = []} {
    return
  }
}

module attributes {stable_mosaic.version = 11 : i64} {
  func.func private @main(%arg0: i32) attributes {dimension_semantics = [#tpu.dimension_semantics<core_parallel>], iteration_bounds = array<i64: 2>, tpu.core_type = #tpu.core_type<sc_scalar_subcore>, window_params = []} {
    return
  }
}

module attributes {stable_mosaic.version = 11 : i64} {
  func.func @kernel(%arg0: i32, %arg1: i32, %arg2: memref<1xi32, #tpu.memory_space<smem>>, %arg3: memref<1xi32, #tpu.memory_space<smem>>, %arg4: memref<128x128xbf16, #tpu.memory_space<vmem>>, %arg5: memref<128x128xbf16, #tpu.memory_space<vmem>>, %arg6: memref<1x128xf32, #tpu.memory_space<vmem>>, %arg7: memref<128x1xf32, #tpu.memory_space<vmem>>, %arg8: memref<128x128xf32, #tpu.memory_space<vmem>>, %arg9: memref<128x128xf32, #tpu.memory_space<vmem>>) attributes {dimension_semantics = [#tpu.dimension_semantics<parallel>, #tpu.dimension_semantics<arbitrary>], iteration_bounds = array<i64: 1, 1>, scalar_prefetch = 2 : i64, scratch_operands = 0 : i64, tpu.core_type = #tpu.core_type<tc>, window_params = [{transform_indices = @transform_0, window_bounds = array<i64: 128, 128>}, {transform_indices = @transform_1, window_bounds = array<i64: 128, 128>}, {transform_indices = @transform_2, window_bounds = array<i64: 1, 128>}, {transform_indices = @transform_3, window_bounds = array<i64: 128, 1>}, {transform_indices = @transform_4, window_bounds = array<i64: 128, 128>}, {transform_indices = @transform_5, window_bounds = array<i64: 128, 128>}]} {
    %c0_i32 = arith.constant 0 : i32
    %0 = arith.cmpi eq, %arg1, %c0_i32 : i32
    %1 = arith.extui %0 : i1 to i32
    %c0_i32_0 = arith.constant 0 : i32
    %2 = arith.cmpi ne, %1, %c0_i32_0 : i32
    scf.if %2 {
      %c0 = arith.constant 0 : index
      %c0_3 = arith.constant 0 : index
      %10 = vector.load %arg8[%c0, %c0_3] : memref<128x128xf32, #tpu.memory_space<vmem>>, vector<128x128xf32>
      %cst = arith.constant 1.000000e-01 : f32
      %11 = vector.broadcast %cst : f32 to vector<128x128xf32>
      %12 = arith.mulf %11, %10 : vector<128x128xf32>
      %c0_4 = arith.constant 0 : index
      %c0_5 = arith.constant 0 : index
      %13 = vector.load %arg9[%c0_4, %c0_5] : memref<128x128xf32, #tpu.memory_space<vmem>>, vector<128x128xf32>
      tpu.vector_store %arg9[%c0_4, %c0_5], %12 {strides = array<i32>} : memref<128x128xf32, #tpu.memory_space<vmem>>, vector<128x128xf32>,
    } else {
    }
    %c1_i32 = arith.constant 1 : i32
    %3 = arith.muli %arg0, %c1_i32 : i32
    %4 = arith.addi %3, %arg1 : i32
    %5 = arith.index_cast %4 : i32 to index
    %6 = memref.load %arg3[%5] : memref<1xi32, #tpu.memory_space<smem>>
    %c0_i32_1 = arith.constant 0 : i32
    %7 = arith.cmpi ne, %6, %c0_i32_1 : i32
    %8 = arith.extui %7 : i1 to i32
    %c0_i32_2 = arith.constant 0 : i32
    %9 = arith.cmpi ne, %8, %c0_i32_2 : i32
    scf.if %9 {
      %c0 = arith.constant 0 : index
      %c0_3 = arith.constant 0 : index
      %10 = vector.load %arg7[%c0, %c0_3] : memref<128x1xf32, #tpu.memory_space<vmem>>, vector<128x1xf32>
      %c0_4 = arith.constant 0 : index
      %c0_5 = arith.constant 0 : index
      %11 = vector.load %arg6[%c0_4, %c0_5] : memref<1x128xf32, #tpu.memory_space<vmem>>, vector<1x128xf32>
      %12 = vector.broadcast %10 : vector<128x1xf32> to vector<128x128xf32>
      %13 = vector.broadcast %11 : vector<1x128xf32> to vector<128x128xf32>
      %14 = arith.addf %12, %13 : vector<128x128xf32>
      %15 = math.tanh %14 : vector<128x128xf32>
      %c0_6 = arith.constant 0 : index
      %c0_7 = arith.constant 0 : index
      %16 = vector.load %arg4[%c0_6, %c0_7] : memref<128x128xbf16, #tpu.memory_space<vmem>>, vector<128x128xbf16>
      %17 = arith.extf %16 : vector<128x128xbf16> to vector<128x128xf32>
      %18 = arith.mulf %17, %15 : vector<128x128xf32>
      %19 = arith.truncf %18 : vector<128x128xf32> to vector<128x128xbf16>
      %c0_8 = arith.constant 0 : index
      %c0_9 = arith.constant 0 : index
      %20 = vector.load %arg9[%c0_8, %c0_9] : memref<128x128xf32, #tpu.memory_space<vmem>>, vector<128x128xf32>
      %c0_10 = arith.constant 0 : index
      %c0_11 = arith.constant 0 : index
      %21 = vector.load %arg5[%c0_10, %c0_11] : memref<128x128xbf16, #tpu.memory_space<vmem>>, vector<128x128xbf16>
      %cst = arith.constant dense<0.000000e+00> : vector<128x128xf32>
      %22 = tpu.matmul %19, %21, %cst {dimension_numbers = #tpu.dot_dimension_numbers<[1], [0], [0], [1], [0, 0, 1, 1], [], []>} : vector<128x128xbf16>, vector<128x128xbf16>, vector<128x128xf32> -> vector<128x128xf32>
      %23 = arith.addf %20, %22 : vector<128x128xf32>
      %c0_12 = arith.constant 0 : index
      %c0_13 = arith.constant 0 : index
      %24 = vector.load %arg9[%c0_12, %c0_13] : memref<128x128xf32, #tpu.memory_space<vmem>>, vector<128x128xf32>
      tpu.vector_store %arg9[%c0_12, %c0_13], %23 {strides = array<i32>} : memref<128x128xf32, #tpu.memory_space<vmem>>, vector<128x128xf32>,
    } else {
    }
    return
  }
  func.func @transform_0(%arg0: i32, %arg1: i32, %arg2: memref<1xi32, #tpu.memory_space<smem>>, %arg3: memref<1xi32, #tpu.memory_space<smem>>) -> (i32, i32) {
    %c1_i32 = arith.constant 1 : i32
    %0 = arith.muli %arg0, %c1_i32 : i32
    %1 = arith.addi %0, %arg1 : i32
    %2 = arith.index_cast %1 : i32 to index
    %3 = memref.load %arg2[%2] : memref<1xi32, #tpu.memory_space<smem>>
    %c0_i32 = arith.constant 0 : i32
    return %arg0, %3 : i32, i32
  }
  func.func @transform_1(%arg0: i32, %arg1: i32, %arg2: memref<1xi32, #tpu.memory_space<smem>>, %arg3: memref<1xi32, #tpu.memory_space<smem>>) -> (i32, i32) {
    %c1_i32 = arith.constant 1 : i32
    %0 = arith.muli %arg0, %c1_i32 : i32
    %1 = arith.addi %0, %arg1 : i32
    %2 = arith.index_cast %1 : i32 to index
    %3 = memref.load %arg2[%2] : memref<1xi32, #tpu.memory_space<smem>>
    %c0_i32 = arith.constant 0 : i32
    %c0_i32_0 = arith.constant 0 : i32
    return %3, %c0_i32 : i32, i32
  }
  func.func @transform_2(%arg0: i32, %arg1: i32, %arg2: memref<1xi32, #tpu.memory_space<smem>>, %arg3: memref<1xi32, #tpu.memory_space<smem>>) -> (i32, i32) {
    %c1_i32 = arith.constant 1 : i32
    %0 = arith.muli %arg0, %c1_i32 : i32
    %1 = arith.addi %0, %arg1 : i32
    %2 = arith.index_cast %1 : i32 to index
    %3 = memref.load %arg2[%2] : memref<1xi32, #tpu.memory_space<smem>>
    %c0_i32 = arith.constant 0 : i32
    %c0_i32_0 = arith.constant 0 : i32
    return %c0_i32, %3 : i32, i32
  }
  func.func @transform_3(%arg0: i32, %arg1: i32, %arg2: memref<1xi32, #tpu.memory_space<smem>>, %arg3: memref<1xi32, #tpu.memory_space<smem>>) -> (i32, i32) {
    %c0_i32 = arith.constant 0 : i32
    %c0_i32_0 = arith.constant 0 : i32
    return %arg0, %c0_i32 : i32, i32
  }
  func.func @transform_4(%arg0: i32, %arg1: i32, %arg2: memref<1xi32, #tpu.memory_space<smem>>, %arg3: memref<1xi32, #tpu.memory_space<smem>>) -> (i32, i32) {
    %c0_i32 = arith.constant 0 : i32
    %c0_i32_0 = arith.constant 0 : i32
    return %arg0, %c0_i32 : i32, i32
  }
  func.func @transform_5(%arg0: i32, %arg1: i32, %arg2: memref<1xi32, #tpu.memory_space<smem>>, %arg3: memref<1xi32, #tpu.memory_space<smem>>) -> (i32, i32) {
    %c0_i32 = arith.constant 0 : i32
    %c0_i32_0 = arith.constant 0 : i32
    return %arg0, %c0_i32 : i32, i32
  }
}

module attributes {stable_mosaic.version = 11 : i64} {
  func.func @_pool_kernel(%arg0: i32, %arg1: memref<8x128xf32, #tpu.memory_space<vmem>>, %arg2: memref<128x128xf32, #tpu.memory_space<vmem>>, %arg3: memref<8x128xf32, #tpu.memory_space<vmem>>) attributes {dimension_semantics = [#tpu.dimension_semantics<arbitrary>], iteration_bounds = array<i64: 1>, scalar_prefetch = 0 : i64, scratch_operands = 0 : i64, tpu.core_type = #tpu.core_type<tc>, window_params = [{transform_indices = @transform_0, window_bounds = array<i64: 8, 128>}, {transform_indices = @transform_1, window_bounds = array<i64: 128, 128>}, {pipeline_mode = #tpu.pipeline_mode<synchronous>, transform_indices = @transform_2, window_bounds = array<i64: 8, 128>}]} {
    %c0_i32 = arith.constant 0 : i32
    %0 = arith.cmpi eq, %arg0, %c0_i32 : i32
    %1 = arith.extui %0 : i1 to i32
    %c0_i32_0 = arith.constant 0 : i32
    %2 = arith.cmpi ne, %1, %c0_i32_0 : i32
    scf.if %2 {
      %cst_8 = arith.constant 0.000000e+00 : f32
      %9 = vector.broadcast %cst_8 : f32 to vector<8x128xf32>
      %c0_9 = arith.constant 0 : index
      %c0_10 = arith.constant 0 : index
      %10 = vector.load %arg3[%c0_9, %c0_10] : memref<8x128xf32, #tpu.memory_space<vmem>>, vector<8x128xf32>
      tpu.vector_store %arg3[%c0_9, %c0_10], %9 {strides = array<i32>} : memref<8x128xf32, #tpu.memory_space<vmem>>, vector<8x128xf32>,
    } else {
    }
    %c0 = arith.constant 0 : index
    %c0_1 = arith.constant 0 : index
    %3 = vector.load %arg3[%c0, %c0_1] : memref<8x128xf32, #tpu.memory_space<vmem>>, vector<8x128xf32>
    %c0_2 = arith.constant 0 : index
    %c0_3 = arith.constant 0 : index
    %4 = vector.load %arg1[%c0_2, %c0_3] : memref<8x128xf32, #tpu.memory_space<vmem>>, vector<8x128xf32>
    %c0_4 = arith.constant 0 : index
    %c0_5 = arith.constant 0 : index
    %5 = vector.load %arg2[%c0_4, %c0_5] : memref<128x128xf32, #tpu.memory_space<vmem>>, vector<128x128xf32>
    %cst = arith.constant dense<0.000000e+00> : vector<8x128xf32>
    %6 = tpu.matmul %4, %5, %cst {dimension_numbers = #tpu.dot_dimension_numbers<[1], [0], [0], [1], [0, 0, 1, 1], [], []>} : vector<8x128xf32>, vector<128x128xf32>, vector<8x128xf32> -> vector<8x128xf32>
    %7 = arith.addf %3, %6 : vector<8x128xf32>
    %c0_6 = arith.constant 0 : index
    %c0_7 = arith.constant 0 : index
    %8 = vector.load %arg3[%c0_6, %c0_7] : memref<8x128xf32, #tpu.memory_space<vmem>>, vector<8x128xf32>
    tpu.vector_store %arg3[%c0_6, %c0_7], %7 {strides = array<i32>} : memref<8x128xf32, #tpu.memory_space<vmem>>, vector<8x128xf32>,
    return
  }
  func.func @transform_0(%arg0: i32) -> (i32, i32) {
    %c0_i32 = arith.constant 0 : i32
    %c0_i32_0 = arith.constant 0 : i32
    return %c0_i32, %arg0 : i32, i32
  }
  func.func @transform_1(%arg0: i32) -> (i32, i32) {
    %c0_i32 = arith.constant 0 : i32
    %c0_i32_0 = arith.constant 0 : i32
    return %arg0, %c0_i32 : i32, i32
  }
  func.func @transform_2(%arg0: i32) -> (i32, i32) {
    %c0_i32 = arith.constant 0 : i32
    %c0_i32_0 = arith.constant 0 : i32
    %c0_i32_1 = arith.constant 0 : i32
    return %c0_i32, %c0_i32_0 : i32, i32
  }
}

</mosaic_0001>

<llo_original>
// kernel: _forward.7
$region0: #{_forward.7}
  #allocation0 [shape = 'u32[]', space=smem, size = 0x4, offset = 0x4, fixed_abs, tag = 'smem constant byte address 0x4 - core index']
  #allocation1 [shape = 'u32[144,128]{1,0:T(1,128)}', space=vmem, size = 0x12000, scoped, tag = 'internal scratch']
  %s0 = inlined_call_operand.vmem [shape: f32[8,128], index: 0, kind: input, shape index: {}]
  %s1 = inlined_call_operand.vmem [shape: f32[128,128], index: 1, kind: input, shape index: {}]
  %s2 = inlined_call_operand.vmem [shape: f32[8,128], index: 2, kind: output, shape index: {}]
  %s3 = sld [smem:[#allocation0]]
  $region22: #{_forward.7} parent=0
    _
  %s5 = ssub.s32 1, %s3
  %s6 = scalar_select 0, %s5, %s3
  // Predicated region
  $region2: #{_forward.7} parent=0 // pred_check
    _
  $region3: #{_forward.7} parent=0 // pred_check_branch
    %8 = sbr.rel (0) target = $region5
  $region4: #{_forward.7} parent=0 // pred_region
    _
  $region5: #{_forward.7} parent=0 // pred_fallthru
    _
  // Predicated region
  $region6: #{_forward.7} parent=0 // pred_check
    _
  $region7: #{_forward.7} parent=0 // pred_check_branch
    %10 = sbr.rel (0) target = $region9
  $region8: #{_forward.7} parent=0 // pred_region
    _
  $region9: #{_forward.7} parent=0 // pred_fallthru
    _
  %p11 = scmp.eq.s32.totalorder 0, 0
  // Predicated region
  $region10: #{_forward.7} parent=0 // pred_check
    %p12 = pneg %p11
  $region11: #{_forward.7} parent=0 // pred_check_branch
    %14 = sbr.rel (%p12) target = $region13
  $region12: #{_forward.7} parent=0 // pred_region
    %15 = vst [vmem:[%s2] sm:$0xff] 0.0
  $region13: #{_forward.7} parent=0 // pred_fallthru
    _
  %v16 = vld [vmem:[%s2] sm:$0xff]
  %v17 = vld [vmem:[%s0] sm:$0xff]
  %v18 = vld [vmem:[%s1] sm:$0xff]
  %v19 = vld [vmem:[%s1 + $0x8] sm:$0xff]
  %v20 = vld [vmem:[%s1 + $0x10] sm:$0xff]
  %v21 = vld [vmem:[%s1 + $0x18] sm:$0xff]
  %v22 = vld [vmem:[%s1 + $0x20] sm:$0xff]
  %v23 = vld [vmem:[%s1 + $0x28] sm:$0xff]
  %v24 = vld [vmem:[%s1 + $0x30] sm:$0xff]
  %v25 = vld [vmem:[%s1 + $0x38] sm:$0xff]
  %v26 = vld [vmem:[%s1 + $0x40] sm:$0xff]
  %v27 = vld [vmem:[%s1 + $0x48] sm:$0xff]
  %v28 = vld [vmem:[%s1 + $0x50] sm:$0xff]
  %v29 = vld [vmem:[%s1 + $0x58] sm:$0xff]
  %v30 = vld [vmem:[%s1 + $0x60] sm:$0xff]
  %v31 = vld [vmem:[%s1 + $0x68] sm:$0xff]
  %v32 = vld [vmem:[%s1 + $0x70] sm:$0xff]
  %v33 = vld [vmem:[%s1 + $0x78] sm:$0xff]
  %34 = vmatprep.subr.mxu0 0.0
  %35 = vmatpush1.msra.mxu0 %v18
  %36 = vmatprep.subr.mxu0 0.0
  %37 = vmatpush1.msra.mxu0 %v19
  %38 = vmatprep.subr.mxu0 0.0
  %39 = vmatpush1.msra.mxu0 %v20
  %40 = vmatprep.subr.mxu0 0.0
  %41 = vmatpush1.msra.mxu0 %v21
  %42 = vmatprep.subr.mxu0 0.0
  %43 = vmatpush1.msra.mxu0 %v22
  %44 = vmatprep.subr.mxu0 0.0
  %45 = vmatpush1.msra.mxu0 %v23
  %46 = vmatprep.subr.mxu0 0.0
  %47 = vmatpush1.msra.mxu0 %v24
  %48 = vmatprep.subr.mxu0 0.0
  %49 = vmatpush1.msra.mxu0 %v25
  %50 = vmatprep.subr.mxu0 0.0
  %51 = vmatpush1.msra.mxu0 %v26
  %52 = vmatprep.subr.mxu0 0.0
  %53 = vmatpush1.msra.mxu0 %v27
  %54 = vmatprep.subr.mxu0 0.0
  %55 = vmatpush1.msra.mxu0 %v28
  %56 = vmatprep.subr.mxu0 0.0
  %57 = vmatpush1.msra.mxu0 %v29
  %58 = vmatprep.subr.mxu0 0.0
  %59 = vmatpush1.msra.mxu0 %v30
  %60 = vmatprep.subr.mxu0 0.0
  %61 = vmatpush1.msra.mxu0 %v31
  %62 = vmatprep.subr.mxu0 0.0
  %63 = vmatpush1.msra.mxu0 %v32
  %64 = vmatprep.subr.mxu0 0.0
  %65 = vmatpush1.msra.mxu0 %v33
  %66 = vmatprep.subr.mxu0 0.0
  %67 = vmatpush1.msra.mxu0 0.0
  %68 = vmatprep.subr.mxu0 0.0
  %69 = vmatpush1.msra.mxu0 0.0
  %70 = vmatprep.subr.mxu0 0.0
  %71 = vmatpush1.msra.mxu0 0.0
  %72 = vmatprep.subr.mxu0 0.0
  %73 = vmatpush1.msra.mxu0 0.0
  %74 = vmatprep.subr.mxu0 0.0
  %75 = vmatpush1.msra.mxu0 0.0
  %76 = vmatprep.subr.mxu0 0.0
  %77 = vmatpush1.msra.mxu0 0.0
  %78 = vmatprep.subr.mxu0 0.0
  %79 = vmatpush1.msra.mxu0 0.0
  %80 = vmatprep.subr.mxu0 0.0
  %81 = vmatpush1.msra.mxu0 0.0
  %82 = vmatprep.subr.mxu0 0.0
  %83 = vmatpush1.msra.mxu0 0.0
  %84 = vmatprep.subr.mxu0 0.0
  %85 = vmatpush1.msra.mxu0 0.0
  %86 = vmatprep.subr.mxu0 0.0
  %87 = vmatpush1.msra.mxu0 0.0
  %88 = vmatprep.subr.mxu0 0.0
  %89 = vmatpush1.msra.mxu0 0.0
  %90 = vmatprep.subr.mxu0 0.0
  %91 = vmatpush1.msra.mxu0 0.0
  %92 = vmatprep.subr.mxu0 0.0
  %93 = vmatpush1.msra.mxu0 0.0
  %94 = vmatprep.subr.mxu0 0.0
  %95 = vmatpush1.msra.mxu0 0.0
  %96 = vmatprep.subr.mxu0 0.0
  %97 = vmatpush1.msra.mxu0 0.0
  %98 = vmatprep.mubr.f32.mxu0 0.0
  %99 = vmatmul.mubr.f32.gmra.mrb[0].mxu0 %v17
  %v100 = vpop.f32.mrb[0].mxu0
  %v101 = vadd.f32 0.0, %v100
  %v102 = vpop.f32.mrb[0].mxu0
  %103 = vdwg.mxu0
  %v104 = vadd.f32 %v16, %v101
  %105 = vst [vmem:[%s2] sm:$0xff] %v104
  // Predicated region
  $region14: #{_forward.7} parent=0 // pred_check
    _
  $region15: #{_forward.7} parent=0 // pred_check_branch
    %107 = sbr.rel (0) target = $region17
  $region16: #{_forward.7} parent=0 // pred_region
    _
  $region17: #{_forward.7} parent=0 // pred_fallthru
    _
  // Predicated region
  $region18: #{_forward.7} parent=0 // pred_check
    _
  $region19: #{_forward.7} parent=0 // pred_check_branch
    %109 = sbr.rel (0) target = $region21
  $region20: #{_forward.7} parent=0 // pred_region
    _
  $region21: #{_forward.7} parent=0 // pred_fallthru
    _

// kernel: _forward.4
$region0: #{_forward.4}
  #allocation0 [shape = 'u32[]', space=smem, size = 0x4, offset = 0x4, fixed_abs, tag = 'smem constant byte address 0x4 - core index']
  #allocation1 [shape = 'u32[144,128]{1,0:T(1,128)}', space=vmem, size = 0x12000, scoped, tag = 'internal scratch']
  #allocation2 [shape = 's32[1]{0}', space=sflag, size = 0x4, scoped, tag = 'scoped memory for _forward.4']
  #allocation3 [shape = 's32[1]{0:T(128)S(6)}', space=smem, size = 0x200, scoped, tag = 'prefetched SMEM operand 0']
  #allocation4 [shape = 's32[1]{0:T(128)S(6)}', space=smem, size = 0x200, scoped, tag = 'prefetched SMEM operand 1']
  %s0 = inlined_call_operand.<no memory space> [shape: s32[1], index: 0, kind: input, shape index: {}]
  %s1 = inlined_call_operand.<no memory space> [shape: s32[1], index: 1, kind: input, shape index: {}]
  %s2 = inlined_call_operand.vmem [shape: bf16[128,128], index: 2, kind: input, shape index: {}]
  %s3 = inlined_call_operand.vmem [shape: bf16[128,128], index: 3, kind: input, shape index: {}]
  %s4 = inlined_call_operand.vmem [shape: f32[1,128], index: 4, kind: input, shape index: {}]
  %s5 = inlined_call_operand.vmem [shape: f32[128,1], index: 5, kind: input, shape index: {}]
  %s6 = inlined_call_operand.vmem [shape: f32[128,128], index: 6, kind: input, shape index: {}]
  %s7 = inlined_call_operand.vmem [shape: f32[128,128], index: 7, kind: output, shape index: {}]
  %s8 = sld [smem:[#allocation0]]
  $region38: #{_forward.4} parent=0
    _
  %s10 = ssub.s32 1, %s8
  %s11 = scalar_select 0, %s10, %s8
  %12 = sst [smem:[#allocation3]] %s0
  %13 = sst [smem:[#allocation4]] %s1
  // Predicated region
  $region2: #{_forward.4} parent=0 // pred_check
    _
  $region3: #{_forward.4} parent=0 // pred_check_branch
    %15 = sbr.rel (0) target = $region5
  $region4: #{_forward.4} parent=0 // pred_region
    %s16 = sadd.s32 0, 0
    %s17 = sld [smem:[#allocation3 + %s16]]
    %p18 = scmp.lt.s32.totalorder %s17, 0
    %s19 = scalar_select %p18, %s17, 0
    %s20 = smul.addr %s19, 4
    %s21 = scalar_lea.vmem %s2, %s20
    %s22 = sadd.s32 0, 0
    %s23 = sld [smem:[#allocation3 + %s22]]
  $region5: #{_forward.4} parent=0 // pred_fallthru
    _
  // Predicated region
  $region6: #{_forward.4} parent=0 // pred_check
    _
  $region7: #{_forward.4} parent=0 // pred_check_branch
    %25 = sbr.rel (0) target = $region9
  $region8: #{_forward.4} parent=0 // pred_region
    %s26 = sadd.s32 0, 0
    %s27 = sld [smem:[#allocation3 + %s26]]
    %s28 = smul.u32 16, %s27
    %p29 = scmp.lt.s32.totalorder %s28, 15
    %s30 = scalar_select %p29, %s28, 15
    %s31 = smul.addr %s30, 4
    %s32 = scalar_lea.vmem %s3, %s31
    %s33 = sadd.s32 0, 0
    %s34 = sld [smem:[#allocation3 + %s33]]
    %s35 = smul.u32 16, %s34
  $region9: #{_forward.4} parent=0 // pred_fallthru
    _
  // Predicated region
  $region10: #{_forward.4} parent=0 // pred_check
    _
  $region11: #{_forward.4} parent=0 // pred_check_branch
    %37 = sbr.rel (0) target = $region13
  $region12: #{_forward.4} parent=0 // pred_region
    %s38 = sadd.s32 0, 0
    %s39 = sld [smem:[#allocation3 + %s38]]
    %p40 = scmp.lt.s32.totalorder %s39, 0
    %s41 = scalar_select %p40, %s39, 0
    %s42 = scalar_lea.vmem %s4, %s41
    %s43 = sadd.s32 0, 0
    %s44 = sld [smem:[#allocation3 + %s43]]
  $region13: #{_forward.4} parent=0 // pred_fallthru
    _
  // Predicated region
  $region14: #{_forward.4} parent=0 // pred_check
    _
  $region15: #{_forward.4} parent=0 // pred_check_branch
    %46 = sbr.rel (0) target = $region17
  $region16: #{_forward.4} parent=0 // pred_region
    _
  $region17: #{_forward.4} parent=0 // pred_fallthru
    _
  // Predicated region
  $region18: #{_forward.4} parent=0 // pred_check
    _
  $region19: #{_forward.4} parent=0 // pred_check_branch
    %48 = sbr.rel (0) target = $region21
  $region20: #{_forward.4} parent=0 // pred_region
    _
  $region21: #{_forward.4} parent=0 // pred_fallthru
    _
  %s49 = sadd.s32 0, 0
  %s50 = sld [smem:[#allocation3 + %s49]]
  %p51 = scmp.lt.s32.totalorder %s50, 0
  %s52 = scalar_select %p51, %s50, 0
  %s53 = smul.addr %s52, 4
  %s54 = scalar_lea.vmem %s2, %s53
  %s55 = sadd.s32 0, 0
  %s56 = sld [smem:[#allocation3 + %s55]]
  %s57 = smul.u32 16, %s56
  %p58 = scmp.lt.s32.totalorder %s57, 15
  %s59 = scalar_select %p58, %s57, 15
  %s60 = smul.addr %s59, 4
  %s61 = scalar_lea.vmem %s3, %s60
  %s62 = sadd.s32 0, 0
  %s63 = sld [smem:[#allocation3 + %s62]]
  %p64 = scmp.lt.s32.totalorder %s63, 0
  %s65 = scalar_select %p64, %s63, 0
  %s66 = scalar_lea.vmem %s4, %s65
  %s67 = sadd.s32 0, 0
  %s68 = sld [smem:[#allocation3 + %s67]]
  %p69 = scmp.lt.s32.totalorder %s68, 0
  %s70 = scalar_select %p69, %s68, 0
  %s71 = smul.addr %s70, 4
  %s72 = scalar_lea.vmem %s2, %s71
  %s73 = sadd.s32 0, 0
  %s74 = sld [smem:[#allocation3 + %s73]]
  %s75 = sadd.s32 0, 0
  %s76 = sld [smem:[#allocation3 + %s75]]
  %s77 = smul.u32 16, %s76
  %p78 = scmp.lt.s32.totalorder %s77, 15
  %s79 = scalar_select %p78, %s77, 15
  %s80 = smul.addr %s79, 4
  %s81 = scalar_lea.vmem %s3, %s80
  %s82 = sadd.s32 0, 0
  %s83 = sld [smem:[#allocation3 + %s82]]
  %s84 = smul.u32 16, %s83
  %s85 = sadd.s32 0, 0
  %s86 = sld [smem:[#allocation3 + %s85]]
  %p87 = scmp.lt.s32.totalorder %s86, 0
  %s88 = scalar_select %p87, %s86, 0
  %s89 = scalar_lea.vmem %s4, %s88
  %s90 = sadd.s32 0, 0
  %s91 = sld [smem:[#allocation3 + %s90]]
  %p93 = scmp.eq.s32.totalorder 0, 0
  // Predicated region
  $region22: #{_forward.4} parent=0 // pred_check
    %p94 = pneg %p93
  $region23: #{_forward.4} parent=0 // pred_check_branch
    %96 = sbr.rel (%p94) target = $region25
  $region24: #{_forward.4} parent=0 // pred_region
    %v97 = vld [vmem:[%s6] sm:$0xff]
    %v98 = vld [vmem:[%s6 + $0x8] sm:$0xff]
    %v99 = vld [vmem:[%s6 + $0x10] sm:$0xff]
    %v100 = vld [vmem:[%s6 + $0x18] sm:$0xff]
    %v101 = vld [vmem:[%s6 + $0x20] sm:$0xff]
    %v102 = vld [vmem:[%s6 + $0x28] sm:$0xff]
    %v103 = vld [vmem:[%s6 + $0x30] sm:$0xff]
    %v104 = vld [vmem:[%s6 + $0x38] sm:$0xff]
    %v105 = vld [vmem:[%s6 + $0x40] sm:$0xff]
    %v106 = vld [vmem:[%s6 + $0x48] sm:$0xff]
    %v107 = vld [vmem:[%s6 + $0x50] sm:$0xff]
    %v108 = vld [vmem:[%s6 + $0x58] sm:$0xff]
    %v109 = vld [vmem:[%s6 + $0x60] sm:$0xff]
    %v110 = vld [vmem:[%s6 + $0x68] sm:$0xff]
    %v111 = vld [vmem:[%s6 + $0x70] sm:$0xff]
    %v112 = vld [vmem:[%s6 + $0x78] sm:$0xff]
    %v113 = vmul.f32 %v97, 0.1
    %v114 = vmul.f32 %v98, 0.1
    %v115 = vmul.f32 %v99, 0.1
    %v116 = vmul.f32 %v100, 0.1
    %v117 = vmul.f32 %v101, 0.1
    %v118 = vmul.f32 %v102, 0.1
    %v119 = vmul.f32 %v103, 0.1
    %v120 = vmul.f32 %v104, 0.1
    %v121 = vmul.f32 %v105, 0.1
    %v122 = vmul.f32 %v106, 0.1
    %v123 = vmul.f32 %v107, 0.1
    %v124 = vmul.f32 %v108, 0.1
    %v125 = vmul.f32 %v109, 0.1
    %v126 = vmul.f32 %v110, 0.1
    %v127 = vmul.f32 %v111, 0.1
    %v128 = vmul.f32 %v112, 0.1
    %129 = vst [vmem:[%s7] sm:$0xff] %v113
    %130 = vst [vmem:[%s7 + $0x8] sm:$0xff] %v114
    %131 = vst [vmem:[%s7 + $0x10] sm:$0xff] %v115
    %132 = vst [vmem:[%s7 + $0x18] sm:$0xff] %v116
    %133 = vst [vmem:[%s7 + $0x20] sm:$0xff] %v117
    %134 = vst [vmem:[%s7 + $0x28] sm:$0xff] %v118
    %135 = vst [vmem:[%s7 + $0x30] sm:$0xff] %v119
    %136 = vst [vmem:[%s7 + $0x38] sm:$0xff] %v120
    %137 = vst [vmem:[%s7 + $0x40] sm:$0xff] %v121
    %138 = vst [vmem:[%s7 + $0x48] sm:$0xff] %v122
    %139 = vst [vmem:[%s7 + $0x50] sm:$0xff] %v123
    %140 = vst [vmem:[%s7 + $0x58] sm:$0xff] %v124
    %141 = vst [vmem:[%s7 + $0x60] sm:$0xff] %v125
    %142 = vst [vmem:[%s7 + $0x68] sm:$0xff] %v126
    %143 = vst [vmem:[%s7 + $0x70] sm:$0xff] %v127
    %144 = vst [vmem:[%s7 + $0x78] sm:$0xff] %v128
  $region25: #{_forward.4} parent=0 // pred_fallthru
    _
  %s145 = sadd.s32 0, 0
  %s146 = sld [smem:[#allocation4 + %s145]]
  %p147 = scmp.ne.s32.totalorder %s146, 0
  // Predicated region
  $region26: #{_forward.4} parent=0 // pred_check
    %p148 = pneg %p147
  $region27: #{_forward.4} parent=0 // pred_check_branch
    %150 = sbr.rel (%p148) target = $region29
  $region28: #{_forward.4} parent=0 // pred_region
    %v151 = vld [vmem:[%s5] sm:$0xff]
    %v152 = vld [vmem:[%s5 + $0x8] sm:$0xff]
    %v153 = vld [vmem:[%s5 + $0x10] sm:$0xff]
    %v154 = vld [vmem:[%s5 + $0x18] sm:$0xff]
    %v155 = vld [vmem:[%s5 + $0x20] sm:$0xff]
    %v156 = vld [vmem:[%s5 + $0x28] sm:$0xff]
    %v157 = vld [vmem:[%s5 + $0x30] sm:$0xff]
    %v158 = vld [vmem:[%s5 + $0x38] sm:$0xff]
    %v159 = vld [vmem:[%s5 + $0x40] sm:$0xff]
    %v160 = vld [vmem:[%s5 + $0x48] sm:$0xff]
    %v161 = vld [vmem:[%s5 + $0x50] sm:$0xff]
    %v162 = vld [vmem:[%s5 + $0x58] sm:$0xff]
    %v163 = vld [vmem:[%s5 + $0x60] sm:$0xff]
    %v164 = vld [vmem:[%s5 + $0x68] sm:$0xff]
    %v165 = vld [vmem:[%s5 + $0x70] sm:$0xff]
    %v166 = vld [vmem:[%s5 + $0x78] sm:$0xff]
    %v167 = vld [vmem:[%s89] sm:$0x1]
    %169 = vset.pattern.permute.xlu0 0
    %170 = vperm.xlu0 %169, %v151
    %v171 = vpop.permute.xlu0 %170
    %174 = vset.pattern.permute.xlu0 0
    %175 = vperm.xlu0 %174, %v152
    %v176 = vpop.permute.xlu0 %175
    %179 = vset.pattern.permute.xlu0 0
    %180 = vperm.xlu0 %179, %v153
    %v181 = vpop.permute.xlu0 %180
    %184 = vset.pattern.permute.xlu0 0
    %185 = vperm.xlu0 %184, %v154
    %v186 = vpop.permute.xlu0 %185
    %189 = vset.pattern.permute.xlu0 0
    %190 = vperm.xlu0 %189, %v155
    %v191 = vpop.permute.xlu0 %190
    %194 = vset.pattern.permute.xlu0 0
    %195 = vperm.xlu0 %194, %v156
    %v196 = vpop.permute.xlu0 %195
    %199 = vset.pattern.permute.xlu0 0
    %200 = vperm.xlu0 %199, %v157
    %v201 = vpop.permute.xlu0 %200
    %204 = vset.pattern.permute.xlu0 0
    %205 = vperm.xlu0 %204, %v158
    %v206 = vpop.permute.xlu0 %205
    %209 = vset.pattern.permute.xlu0 0
    %210 = vperm.xlu0 %209, %v159
    %v211 = vpop.permute.xlu0 %210
    %214 = vset.pattern.permute.xlu0 0
    %215 = vperm.xlu0 %214, %v160
    %v216 = vpop.permute.xlu0 %215
    %219 = vset.pattern.permute.xlu0 0
    %220 = vperm.xlu0 %219, %v161
    %v221 = vpop.permute.xlu0 %220
    %224 = vset.pattern.permute.xlu0 0
    %225 = vperm.xlu0 %224, %v162
    %v226 = vpop.permute.xlu0 %225
    %229 = vset.pattern.permute.xlu0 0
    %230 = vperm.xlu0 %229, %v163
    %v231 = vpop.permute.xlu0 %230
    %234 = vset.pattern.permute.xlu0 0
    %235 = vperm.xlu0 %234, %v164
    %v236 = vpop.permute.xlu0 %235
    %239 = vset.pattern.permute.xlu0 0
    %240 = vperm.xlu0 %239, %v165
    %v241 = vpop.permute.xlu0 %240
    %244 = vset.pattern.permute.xlu0 0
    %245 = vperm.xlu0 %244, %v166
    %v246 = vpop.permute.xlu0 %245
    %v249 = vlaneseq
    %v250 = vshrl.u32 %v249, 7
    %v251 = vsub.s32 0, %v250
    %v252 = vrot.slane %v167, %v251
    %v254 = vadd.f32 %v171, %v252
    %v255 = vadd.f32 %v176, %v252
    %v256 = vadd.f32 %v181, %v252
    %v257 = vadd.f32 %v186, %v252
    %v258 = vadd.f32 %v191, %v252
    %v259 = vadd.f32 %v196, %v252
    %v260 = vadd.f32 %v201, %v252
    %v261 = vadd.f32 %v206, %v252
    %v262 = vadd.f32 %v211, %v252
    %v263 = vadd.f32 %v216, %v252
    %v264 = vadd.f32 %v221, %v252
    %v265 = vadd.f32 %v226, %v252
    %v266 = vadd.f32 %v231, %v252
    %v267 = vadd.f32 %v236, %v252
    %v268 = vadd.f32 %v241, %v252
    %v269 = vadd.f32 %v246, %v252
    %v270 = vtanh.pop %v254
    %v271 = vtanh.pop %v255
    %v272 = vtanh.pop %v256
    %v273 = vtanh.pop %v257
    %v274 = vtanh.pop %v258
    %v275 = vtanh.pop %v259
    %v276 = vtanh.pop %v260
    %v277 = vtanh.pop %v261
    %v278 = vtanh.pop %v262
    %v279 = vtanh.pop %v263
    %v280 = vtanh.pop %v264
    %v281 = vtanh.pop %v265
    %v282 = vtanh.pop %v266
    %v283 = vtanh.pop %v267
    %v284 = vtanh.pop %v268
    %v285 = vtanh.pop %v269
    %v286 = vld [vmem:[%s72] sm:$0xf]
    %v287 = vld [vmem:[%s72 + $0x4] sm:$0xf]
    %v288 = vld [vmem:[%s72 + $0x8] sm:$0xf]
    %v289 = vld [vmem:[%s72 + $0xc] sm:$0xf]
    %v290 = vld [vmem:[%s72 + $0x10] sm:$0xf]
    %v291 = vld [vmem:[%s72 + $0x14] sm:$0xf]
    %v292 = vld [vmem:[%s72 + $0x18] sm:$0xf]
    %v293 = vld [vmem:[%s72 + $0x1c] sm:$0xf]
    %v294 = vld [vmem:[%s72 + $0x20] sm:$0xf]
    %v295 = vld [vmem:[%s72 + $0x24] sm:$0xf]
    %v296 = vld [vmem:[%s72 + $0x28] sm:$0xf]
    %v297 = vld [vmem:[%s72 + $0x2c] sm:$0xf]
    %v298 = vld [vmem:[%s72 + $0x30] sm:$0xf]
    %v299 = vld [vmem:[%s72 + $0x34] sm:$0xf]
    %v300 = vld [vmem:[%s72 + $0x38] sm:$0xf]
    %v301 = vld [vmem:[%s72 + $0x3c] sm:$0xf]
    %v302 = vunpack.c.l.bf16 %v286
    %v303 = vunpack.c.l.bf16 %v287
    %v304 = vunpack.c.l.bf16 %v288
    %v305 = vunpack.c.l.bf16 %v289
    %v306 = vunpack.c.l.bf16 %v290
    %v307 = vunpack.c.l.bf16 %v291
    %v308 = vunpack.c.l.bf16 %v292
    %v309 = vunpack.c.l.bf16 %v293
    %v310 = vunpack.c.l.bf16 %v294
    %v311 = vunpack.c.l.bf16 %v295
    %v312 = vunpack.c.l.bf16 %v296
    %v313 = vunpack.c.l.bf16 %v297
    %v314 = vunpack.c.l.bf16 %v298
    %v315 = vunpack.c.l.bf16 %v299
    %v316 = vunpack.c.l.bf16 %v300
    %v317 = vunpack.c.l.bf16 %v301
    %v318 = vmul.f32 %v302, %v270
    %v319 = vmul.f32 %v303, %v271
    %v320 = vmul.f32 %v304, %v272
    %v321 = vmul.f32 %v305, %v273
    %v322 = vmul.f32 %v306, %v274
    %v323 = vmul.f32 %v307, %v275
    %v324 = vmul.f32 %v308, %v276
    %v325 = vmul.f32 %v309, %v277
    %v326 = vmul.f32 %v310, %v278
    %v327 = vmul.f32 %v311, %v279
    %v328 = vmul.f32 %v312, %v280
    %v329 = vmul.f32 %v313, %v281
    %v330 = vmul.f32 %v314, %v282
    %v331 = vmul.f32 %v315, %v283
    %v332 = vmul.f32 %v316, %v284
    %v333 = vmul.f32 %v317, %v285
    %v334 = vpack.c.bf16 %v319, %v318
    %v335 = vpack.c.bf16 %v321, %v320
    %v336 = vpack.c.bf16 %v323, %v322
    %v337 = vpack.c.bf16 %v325, %v324
    %v338 = vpack.c.bf16 %v327, %v326
    %v339 = vpack.c.bf16 %v329, %v328
    %v340 = vpack.c.bf16 %v331, %v330
    %v341 = vpack.c.bf16 %v333, %v332
    %v342 = vld [vmem:[%s7] sm:$0xff]
    %v343 = vld [vmem:[%s7 + $0x8] sm:$0xff]
    %v344 = vld [vmem:[%s7 + $0x10] sm:$0xff]
    %v345 = vld [vmem:[%s7 + $0x18] sm:$0xff]
    %v346 = vld [vmem:[%s7 + $0x20] sm:$0xff]
    %v347 = vld [vmem:[%s7 + $0x28] sm:$0xff]
    %v348 = vld [vmem:[%s7 + $0x30] sm:$0xff]
    %v349 = vld [vmem:[%s7 + $0x38] sm:$0xff]
    %v350 = vld [vmem:[%s7 + $0x40] sm:$0xff]
    %v351 = vld [vmem:[%s7 + $0x48] sm:$0xff]
    %v352 = vld [vmem:[%s7 + $0x50] sm:$0xff]
    %v353 = vld [vmem:[%s7 + $0x58] sm:$0xff]
    %v354 = vld [vmem:[%s7 + $0x60] sm:$0xff]
    %v355 = vld [vmem:[%s7 + $0x68] sm:$0xff]
    %v356 = vld [vmem:[%s7 + $0x70] sm:$0xff]
    %v357 = vld [vmem:[%s7 + $0x78] sm:$0xff]
    %v358 = vld [vmem:[%s81] sm:$0xf]
    %v359 = vld [vmem:[%s81 + $0x4] sm:$0xf]
    %v360 = vld [vmem:[%s81 + $0x8] sm:$0xf]
    %v361 = vld [vmem:[%s81 + $0xc] sm:$0xf]
    %v362 = vld [vmem:[%s81 + $0x10] sm:$0xf]
    %v363 = vld [vmem:[%s81 + $0x14] sm:$0xf]
    %v364 = vld [vmem:[%s81 + $0x18] sm:$0xf]
    %v365 = vld [vmem:[%s81 + $0x1c] sm:$0xf]
    %v366 = vld [vmem:[%s81 + $0x20] sm:$0xf]
    %v367 = vld [vmem:[%s81 + $0x24] sm:$0xf]
    %v368 = vld [vmem:[%s81 + $0x28] sm:$0xf]
    %v369 = vld [vmem:[%s81 + $0x2c] sm:$0xf]
    %v370 = vld [vmem:[%s81 + $0x30] sm:$0xf]
    %v371 = vld [vmem:[%s81 + $0x34] sm:$0xf]
    %v372 = vld [vmem:[%s81 + $0x38] sm:$0xf]
    %v373 = vld [vmem:[%s81 + $0x3c] sm:$0xf]
    %v390 = vunpack.c.l.b16 %v358
    %v391 = vunpack.c.l.b16 %v359
    %v392 = vunpack.c.l.b16 %v360
    %v393 = vunpack.c.l.b16 %v361
    %v394 = vunpack.c.l.b16 %v362
    %v395 = vunpack.c.l.b16 %v363
    %v396 = vunpack.c.l.b16 %v364
    %v397 = vunpack.c.l.b16 %v365
    %v398 = vunpack.c.l.b16 %v366
    %v399 = vunpack.c.l.b16 %v367
    %v400 = vunpack.c.l.b16 %v368
    %v401 = vunpack.c.l.b16 %v369
    %v402 = vunpack.c.l.b16 %v370
    %v403 = vunpack.c.l.b16 %v371
    %v404 = vunpack.c.l.b16 %v372
    %v405 = vunpack.c.l.b16 %v373
    %v406 = vpack.c.b16 %v391, %v390
    %v407 = vpack.c.b16 %v393, %v392
    %v408 = vpack.c.b16 %v395, %v394
    %v409 = vpack.c.b16 %v397, %v396
    %v410 = vpack.c.b16 %v399, %v398
    %v411 = vpack.c.b16 %v401, %v400
    %v412 = vpack.c.b16 %v403, %v402
    %v413 = vpack.c.b16 %v405, %v404
    %422 = vmatprep.subr.bf16.mxu0 0
    %423 = vmatpush1.bf16.msra.mxu0 %v406
    %424 = vmatprep.subr.bf16.mxu0 0
    %425 = vmatpush1.bf16.msra.mxu0 %v407
    %426 = vmatprep.subr.bf16.mxu0 0
    %427 = vmatpush1.bf16.msra.mxu0 %v408
    %428 = vmatprep.subr.bf16.mxu0 0
    %429 = vmatpush1.bf16.msra.mxu0 %v409
    %430 = vmatprep.subr.bf16.mxu0 0
    %431 = vmatpush1.bf16.msra.mxu0 %v410
    %432 = vmatprep.subr.bf16.mxu0 0
    %433 = vmatpush1.bf16.msra.mxu0 %v411
    %434 = vmatprep.subr.bf16.mxu0 0
    %435 = vmatpush1.bf16.msra.mxu0 %v412
    %436 = vmatprep.subr.bf16.mxu0 0
    %437 = vmatpush1.bf16.msra.mxu0 %v413
    %438 = vmatprep.subr.bf16.mxu0 0
    %439 = vmatpush1.bf16.msra.mxu0 0
    %440 = vmatprep.subr.bf16.mxu0 0
    %441 = vmatpush1.bf16.msra.mxu0 0
    %442 = vmatprep.subr.bf16.mxu0 0
    %443 = vmatpush1.bf16.msra.mxu0 0
    %444 = vmatprep.subr.bf16.mxu0 0
    %445 = vmatpush1.bf16.msra.mxu0 0
    %446 = vmatprep.subr.bf16.mxu0 0
    %447 = vmatpush1.bf16.msra.mxu0 0
    %448 = vmatprep.subr.bf16.mxu0 0
    %449 = vmatpush1.bf16.msra.mxu0 0
    %450 = vmatprep.subr.bf16.mxu0 0
    %451 = vmatpush1.bf16.msra.mxu0 0
    %452 = vmatprep.subr.bf16.mxu0 0
    %453 = vmatpush1.bf16.msra.mxu0 0
    %454 = vmatprep.mubr.bf16.mxu0 0
    %455 = vmatmul.mubr.bf16.gmra.mrb[0].mxu0 %v334
    %v456 = vpop.f32.mrb[0].mxu0
    %v457 = vadd.f32 0.0, %v456
    %v458 = vpop.f32.mrb[0].mxu0
    %v459 = vpop.f32.mrb[0].mxu0
    %v460 = vadd.f32 0.0, %v459
    %v461 = vpop.f32.mrb[0].mxu0
    %462 = vmatprep.mubr.bf16.mxu0 0
    %463 = vmatmul.mubr.bf16.gmra.mrb[0].mxu0 %v335
    %v464 = vpop.f32.mrb[0].mxu0
    %v465 = vadd.f32 0.0, %v464
    %v466 = vpop.f32.mrb[0].mxu0
    %v467 = vpop.f32.mrb[0].mxu0
    %v468 = vadd.f32 0.0, %v467
    %v469 = vpop.f32.mrb[0].mxu0
    %470 = vmatprep.mubr.bf16.mxu0 0
    %471 = vmatmul.mubr.bf16.gmra.mrb[0].mxu0 %v336
    %v472 = vpop.f32.mrb[0].mxu0
    %v473 = vadd.f32 0.0, %v472
    %v474 = vpop.f32.mrb[0].mxu0
    %v475 = vpop.f32.mrb[0].mxu0
    %v476 = vadd.f32 0.0, %v475
    %v477 = vpop.f32.mrb[0].mxu0
    %478 = vmatprep.mubr.bf16.mxu0 0
    %479 = vmatmul.mubr.bf16.gmra.mrb[0].mxu0 %v337
    %v480 = vpop.f32.mrb[0].mxu0
    %v481 = vadd.f32 0.0, %v480
    %v482 = vpop.f32.mrb[0].mxu0
    %v483 = vpop.f32.mrb[0].mxu0
    %v484 = vadd.f32 0.0, %v483
    %v485 = vpop.f32.mrb[0].mxu0
    %486 = vmatprep.mubr.bf16.mxu0 0
    %487 = vmatmul.mubr.bf16.gmra.mrb[0].mxu0 %v338
    %v488 = vpop.f32.mrb[0].mxu0
    %v489 = vadd.f32 0.0, %v488
    %v490 = vpop.f32.mrb[0].mxu0
    %v491 = vpop.f32.mrb[0].mxu0
    %v492 = vadd.f32 0.0, %v491
    %v493 = vpop.f32.mrb[0].mxu0
    %494 = vmatprep.mubr.bf16.mxu0 0
    %495 = vmatmul.mubr.bf16.gmra.mrb[0].mxu0 %v339
    %v496 = vpop.f32.mrb[0].mxu0
    %v497 = vadd.f32 0.0, %v496
    %v498 = vpop.f32.mrb[0].mxu0
    %v499 = vpop.f32.mrb[0].mxu0
    %v500 = vadd.f32 0.0, %v499
    %v501 = vpop.f32.mrb[0].mxu0
    %502 = vmatprep.mubr.bf16.mxu0 0
    %503 = vmatmul.mubr.bf16.gmra.mrb[0].mxu0 %v340
    %v504 = vpop.f32.mrb[0].mxu0
    %v505 = vadd.f32 0.0, %v504
    %v506 = vpop.f32.mrb[0].mxu0
    %v507 = vpop.f32.mrb[0].mxu0
    %v508 = vadd.f32 0.0, %v507
    %v509 = vpop.f32.mrb[0].mxu0
    %510 = vmatprep.mubr.bf16.mxu0 0
    %511 = vmatmul.mubr.bf16.gmra.mrb[0].mxu0 %v341
    %v512 = vpop.f32.mrb[0].mxu0
    %v513 = vadd.f32 0.0, %v512
    %v514 = vpop.f32.mrb[0].mxu0
    %v515 = vpop.f32.mrb[0].mxu0
    %v516 = vadd.f32 0.0, %v515
    %v517 = vpop.f32.mrb[0].mxu0
    %518 = vdwg.mxu0
    %v519 = vadd.f32 %v342, %v457
    %v520 = vadd.f32 %v343, %v460
    %v521 = vadd.f32 %v344, %v465
    %v522 = vadd.f32 %v345, %v468
    %v523 = vadd.f32 %v346, %v473
    %v524 = vadd.f32 %v347, %v476
    %v525 = vadd.f32 %v348, %v481
    %v526 = vadd.f32 %v349, %v484
    %v527 = vadd.f32 %v350, %v489
    %v528 = vadd.f32 %v351, %v492
    %v529 = vadd.f32 %v352, %v497
    %v530 = vadd.f32 %v353, %v500
    %v531 = vadd.f32 %v354, %v505
    %v532 = vadd.f32 %v355, %v508
    %v533 = vadd.f32 %v356, %v513
    %v534 = vadd.f32 %v357, %v516
    %535 = vst [vmem:[%s7] sm:$0xff] %v519
    %536 = vst [vmem:[%s7 + $0x8] sm:$0xff] %v520
    %537 = vst [vmem:[%s7 + $0x10] sm:$0xff] %v521
    %538 = vst [vmem:[%s7 + $0x18] sm:$0xff] %v522
    %539 = vst [vmem:[%s7 + $0x20] sm:$0xff] %v523
    %540 = vst [vmem:[%s7 + $0x28] sm:$0xff] %v524
    %541 = vst [vmem:[%s7 + $0x30] sm:$0xff] %v525
    %542 = vst [vmem:[%s7 + $0x38] sm:$0xff] %v526
    %543 = vst [vmem:[%s7 + $0x40] sm:$0xff] %v527
    %544 = vst [vmem:[%s7 + $0x48] sm:$0xff] %v528
    %545 = vst [vmem:[%s7 + $0x50] sm:$0xff] %v529
    %546 = vst [vmem:[%s7 + $0x58] sm:$0xff] %v530
    %547 = vst [vmem:[%s7 + $0x60] sm:$0xff] %v531
    %548 = vst [vmem:[%s7 + $0x68] sm:$0xff] %v532
    %549 = vst [vmem:[%s7 + $0x70] sm:$0xff] %v533
    %550 = vst [vmem:[%s7 + $0x78] sm:$0xff] %v534
  $region29: #{_forward.4} parent=0 // pred_fallthru
    _
  // Predicated region
  $region30: #{_forward.4} parent=0 // pred_check
    _
  $region31: #{_forward.4} parent=0 // pred_check_branch
    %552 = sbr.rel (0) target = $region33
  $region32: #{_forward.4} parent=0 // pred_region
    _
  $region33: #{_forward.4} parent=0 // pred_fallthru
    _
  // Predicated region
  $region34: #{_forward.4} parent=0 // pred_check
    _
  $region35: #{_forward.4} parent=0 // pred_check_branch
    %554 = sbr.rel (0) target = $region37
  $region36: #{_forward.4} parent=0 // pred_region
    _
  $region37: #{_forward.4} parent=0 // pred_fallthru
    _

</llo_original>
